<compile_context>
chip_gen: v5e
topology: v5e:2x2
jax: 0.10.0
libtpu: 0.0.40
codegen_flags: <defaults>
</compile_context>

<pallas_src>
import functools

import jax
import jax.numpy as jnp
from jax.experimental import pallas as pl
from jax.experimental.pallas import tpu as pltpu


# ---------------------------------------------------------------------------
# Kernels
# ---------------------------------------------------------------------------

def _self_output_kernel(hs_ref, inp_ref, w_ref, b_ref, g_ref, beta_ref,
                        o_ref, *, eps: float):
    """Dense + bias + residual + LayerNorm; whole [H, H] weight resident."""
    hs = hs_ref[...]
    w = w_ref[...]
    if hs.dtype != w.dtype:          # weight was pre-cast once in the wrapper
        hs = hs.astype(w.dtype)
    x = jnp.dot(hs, w, preferred_element_type=jnp.float32)

    # Bias + residual add (params already f32 from the wrapper).
    x = x + (inp_ref[...].astype(jnp.float32) + b_ref[...])

    # LayerNorm over the hidden (last) axis, statistics in f32.
    mean = jnp.mean(x, axis=-1, keepdims=True)
    centered = x - mean
    var = jnp.mean(centered * centered, axis=-1, keepdims=True)
    y = centered * jax.lax.rsqrt(var + eps)
    o_ref[...] = (y * g_ref[...] + beta_ref[...]).astype(o_ref.dtype)


def _self_output_kernel_ktiled(hs_ref, inp_ref, w_ref, b_ref, g_ref, beta_ref,
                               o_ref, acc_ref, *, eps: float):
    """Same op with the reduction (K) axis tiled; f32 accumulator scratch."""
    k = pl.program_id(1)

    @pl.when(k == 0)
    def _():
        acc_ref[...] = jnp.zeros_like(acc_ref)

    hs = hs_ref[...]
    w = w_ref[...]
    if hs.dtype != w.dtype:
        hs = hs.astype(w.dtype)
    acc_ref[...] += jnp.dot(hs, w, preferred_element_type=jnp.float32)

    @pl.when(k == pl.num_programs(1) - 1)
    def _():
        x = acc_ref[...] + (inp_ref[...].astype(jnp.float32) + b_ref[...])
        mean = jnp.mean(x, axis=-1, keepdims=True)
        centered = x - mean
        var = jnp.mean(centered * centered, axis=-1, keepdims=True)
        y = centered * jax.lax.rsqrt(var + eps)
        o_ref[...] = (y * g_ref[...] + beta_ref[...]).astype(o_ref.dtype)


# ---------------------------------------------------------------------------
# Tiling helpers
# ---------------------------------------------------------------------------

def _vmem_capacity_bytes(default: int = 64 << 20) -> int:
    """Physical VMEM capacity (v5e/v6e 128 MiB, v7x 64 MiB); safe fallback."""
    try:
        cap = getattr(pltpu.get_tpu_info(), "vmem_capacity_bytes", None)
        if cap:
            return int(cap)
    except Exception:
        pass
    return default


def _pick_tile_s(S: int, sublane: int, max_rows: int) -> int:
    """Largest sublane-aligned divisor of S that fits, preferring >=2 grid
    steps (pipeline overlap) and >=4 steps (>=2 per TC on v7x) when the tile
    stays >=128 rows."""
    max_rows = max(int(max_rows), 1)
    divs = [d for d in range(1, min(S, max_rows) + 1)
            if S % d == 0 and d % sublane == 0]
    if not divs:
        # TODO(synk): awkward S with no sublane-aligned divisor -> single full
        # block; pad/mask the last tile instead if this ever blows VMEM.
        return S
    best = max(divs)
    two = [d for d in divs if S // d >= 2]
    if two:
        best = max(two)
    four = [d for d in divs if S // d >= 4 and d >= 128]
    if four:
        best = max(four)
    return best


def _pick_tile_k(H: int, max_k: int = 512):
    """Largest lane-aligned (multiple-of-128) divisor of H, capped at max_k."""
    cands = [d for d in range(128, min(H, max_k) + 1, 128) if H % d == 0]
    return max(cands) if cands else None


# ---------------------------------------------------------------------------
# Wrapper
# ---------------------------------------------------------------------------

def bert_self_output(hidden_states, input_tensor, weight, bias, gamma, beta,
                     *, eps: float = 1e-12,
                     tile_s: int | None = None,
                     tile_k: int | None = None,
                     matmul_dtype=jnp.bfloat16,
                     out_dtype=None):
    """Fused dense + residual-add + LayerNorm.

    hidden_states, input_tensor: [S, H]   (any float dtype; bf16 I/O supported)
    weight: [H, H]  (in_features, out_features)
    bias, gamma, beta: [H]
    matmul_dtype: dtype for the MXU operands (default bf16; the weight is
                  pre-cast once on the HBM side).  Accumulation + LN stay f32.
    tile_k: force the K-tiled reduction path with this reduction tile size
            (auto-selected when the resident weight would not fit in VMEM).
    """
    S, H = hidden_states.shape
    assert input_tensor.shape == (S, H) and weight.shape == (H, H)
    out_dtype = out_dtype or hidden_states.dtype

    # Pre-cast the weight ONCE on the HBM side (halves weight DMA + resident
    # VMEM, kills the per-step HxH cast).  Activations are cast per-tile in the
    # kernel only when their dtype differs from the weight's.
    if matmul_dtype is not None and weight.dtype != jnp.dtype(matmul_dtype):
        weight = weight.astype(matmul_dtype)
    w_it = jnp.dtype(weight.dtype).itemsize
    w_bytes = H * H * w_it

    act_it = jnp.dtype(hidden_states.dtype).itemsize
    out_it = jnp.dtype(out_dtype).itemsize
    sublane = max(8, 32 // act_it)           # 8 (f32), 16 (bf16), 32 (int8)

    # Per-channel params: cast to f32 once, broadcastable [1, H] rows.
    bias2 = bias.astype(jnp.float32).reshape(1, H)
    gamma2 = gamma.astype(jnp.float32).reshape(1, H)
    beta2 = beta.astype(jnp.float32).reshape(1, H)
    param_bytes = 3 * H * 4

    cap = _vmem_capacity_bytes()
    usable = max(cap - (12 << 20), 16 << 20)  # headroom for compiler scratch

    # Path choice: keep the whole [H, H] weight resident when it fits
    # comfortably; otherwise (large H on v7x's 64 MiB VMEM) tile the reduction.
    use_k = tile_k is not None
    if not use_k and w_bytes > usable // 2 and _pick_tile_k(H) is not None:
        use_k = True

    resident = pl.Buffered(1)                # constant index_map -> 1 buffer
    cast_bytes = w_it if hidden_states.dtype != weight.dtype else 0

    if not use_k:
        # Per-row working set: hs + residual (double-buffered), output
        # (double-buffered), ~4 live f32 LN temporaries, in-kernel cast copy.
        per_row = H * (2 * 2 * act_it + 2 * out_it + 4 * 4 + cast_bytes)
        budget = max(usable - w_bytes - param_bytes, per_row * sublane)
        max_rows = min(1024, budget // per_row)
        if tile_s is None:
            tile_s = _pick_tile_s(S, sublane, max_rows)
        assert S % tile_s == 0, (S, tile_s)

        vmem_est = tile_s * per_row + w_bytes + param_bytes
        grid = (S // tile_s,)
        in_specs = [
            pl.BlockSpec((tile_s, H), lambda i: (i, 0)),                 # hs
            pl.BlockSpec((tile_s, H), lambda i: (i, 0)),                 # residual
            pl.BlockSpec((H, H), lambda i: (0, 0), pipeline_mode=resident),
            pl.BlockSpec((1, H), lambda i: (0, 0), pipeline_mode=resident),
            pl.BlockSpec((1, H), lambda i: (0, 0), pipeline_mode=resident),
            pl.BlockSpec((1, H), lambda i: (0, 0), pipeline_mode=resident),
        ]
        out_specs = pl.BlockSpec((tile_s, H), lambda i: (i, 0))
        scratch_shapes = []
        dim_sem = ("parallel",)
        kernel = functools.partial(_self_output_kernel, eps=eps)
    else:
        if tile_k is None:
            tile_k = _pick_tile_k(H)
        assert tile_k is not None and H % tile_k == 0 and tile_k % 128 == 0, \
            (H, tile_k)
        per_row = (2 * tile_k * act_it          # hs blocks, double-buffered
                   + 2 * H * act_it             # residual, double-buffered
                   + 2 * H * out_it             # output, double-buffered
                   + H * 4                      # f32 accumulator scratch
                   + 3 * H * 4                  # f32 LN temporaries (finalize)
                   + tile_k * cast_bytes)       # in-kernel cast of hs block
        w_blk_bytes = 2 * tile_k * H * w_it     # weight blocks, double-buffered
        budget = max(usable - w_blk_bytes - param_bytes, per_row * sublane)
        max_rows = min(1024, budget // per_row)
        if tile_s is None:
            tile_s = _pick_tile_s(S, sublane, max_rows)
        assert S % tile_s == 0, (S, tile_s)

        vmem_est = tile_s * per_row + w_blk_bytes + param_bytes
        grid = (S // tile_s, H // tile_k)
        in_specs = [
            pl.BlockSpec((tile_s, tile_k), lambda i, k: (i, k)),         # hs
            pl.BlockSpec((tile_s, H), lambda i, k: (i, 0)),              # residual
            pl.BlockSpec((tile_k, H), lambda i, k: (k, 0)),              # weight
            pl.BlockSpec((1, H), lambda i, k: (0, 0), pipeline_mode=resident),
            pl.BlockSpec((1, H), lambda i, k: (0, 0), pipeline_mode=resident),
            pl.BlockSpec((1, H), lambda i, k: (0, 0), pipeline_mode=resident),
        ]
        out_specs = pl.BlockSpec((tile_s, H), lambda i, k: (i, 0))
        scratch_shapes = [pltpu.VMEM((tile_s, H), jnp.float32)]
        dim_sem = ("parallel", "arbitrary")
        kernel = functools.partial(_self_output_kernel_ktiled, eps=eps)

    vmem_limit = int(min(cap - (2 << 20),
                         max(vmem_est + (8 << 20), 32 << 20)))

    cost = pl.CostEstimate(
        flops=2 * S * H * H,
        transcendentals=S,                    # one rsqrt per row
        bytes_accessed=int(2 * S * H * act_it + S * H * out_it
                           + w_bytes + param_bytes))

    return pl.pallas_call(
        kernel,
        out_shape=jax.ShapeDtypeStruct((S, H), out_dtype),
        grid_spec=pltpu.PrefetchScalarGridSpec(
            num_scalar_prefetch=0,
            grid=grid,
            in_specs=in_specs,
            out_specs=out_specs,
            scratch_shapes=scratch_shapes,
        ),
        compiler_params=pltpu.CompilerParams(
            dimension_semantics=dim_sem,
            vmem_limit_bytes=vmem_limit),
        cost_estimate=cost,
    )(hidden_states, input_tensor, weight, bias2, gamma2, beta2)


# ---------------------------------------------------------------------------
# Pure-JAX reference
# ---------------------------------------------------------------------------

def bert_self_output_ref(hidden_states, input_tensor, weight, bias, gamma,
                         beta, *, eps: float = 1e-12,
                         matmul_dtype=jnp.bfloat16):
    if matmul_dtype is not None:
        hs_mm = hidden_states.astype(matmul_dtype)
        w_mm = weight.astype(matmul_dtype)
    else:
        hs_mm = hidden_states.astype(jnp.float32)
        w_mm = weight.astype(jnp.float32)
    x = jnp.dot(hs_mm, w_mm, preferred_element_type=jnp.float32)
    x = x + bias.astype(jnp.float32) + input_tensor.astype(jnp.float32)
    mean = jnp.mean(x, axis=-1, keepdims=True)
    var = jnp.mean((x - mean) ** 2, axis=-1, keepdims=True)
    y = (x - mean) * jax.lax.rsqrt(var + eps)
    y = y * gamma.astype(jnp.float32) + beta.astype(jnp.float32)
    return y.astype(hidden_states.dtype)


# ---------------------------------------------------------------------------
# Self-test
# ---------------------------------------------------------------------------

if __name__ == "__main__":
    eps = 1e-12
    key = jax.random.PRNGKey(0)

    def make_inputs(seq, hidden, k, act_dtype=jnp.float32):
        k_hs, k_in, k_w, k_b, k_g, k_beta = jax.random.split(k, 6)
        hs = jax.random.normal(k_hs, (seq, hidden), jnp.float32).astype(act_dtype)
        inp = jax.random.normal(k_in, (seq, hidden), jnp.float32).astype(act_dtype)
        w = jax.random.normal(k_w, (hidden, hidden), jnp.float32) * 0.02
        b = jax.random.normal(k_b, (hidden,), jnp.float32) * 0.02
        g = 1.0 + 0.01 * jax.random.normal(k_g, (hidden,), jnp.float32)
        be = 0.01 * jax.random.normal(k_beta, (hidden,), jnp.float32)
        return hs, inp, w, b, g, be

    def check(out, ref, atol, rtol, name):
        out32 = jnp.asarray(out, jnp.float32)
        ref32 = jnp.asarray(ref, jnp.float32)
        err = float(jnp.max(jnp.abs(out32 - ref32)))
        assert jnp.allclose(out32, ref32, atol=atol, rtol=rtol), \
            f"{name}: max err {err}"

    keys = jax.random.split(key, 3)

    # 1) Small shape from the module spec (seq=8, hidden=32), exact f32 matmul.
    args = make_inputs(8, 32, keys[0])
    out = jax.block_until_ready(
        bert_self_output(*args, eps=eps, matmul_dtype=None))
    assert out.shape == (8, 32)
    check(out, bert_self_output_ref(*args, eps=eps, matmul_dtype=None),
          1e-5, 1e-5, "small-f32")

    # 2) Same small shape with the default bf16 MXU operands (f32 accum + LN),
    #    compared against a bf16-operand reference (tight tolerance).
    out = jax.block_until_ready(bert_self_output(*args, eps=eps))
    check(out, bert_self_output_ref(*args, eps=eps), 1e-2, 1e-2, "small-bf16mm")

    # 3) Pipelined resident-weight path: seq=512 -> 4 grid steps of 128 rows.
    args = make_inputs(512, 256, keys[1])
    ref = bert_self_output_ref(*args, eps=eps)
    out = jax.block_until_ready(bert_self_output(*args, eps=eps))
    check(out, ref, 1e-2, 1e-2, "pipelined")

    # 4) K-tiled reduction path (forced here; auto-selected for large H when
    #    the resident weight would not fit VMEM, e.g. big H on v7x).
    out = jax.block_until_ready(bert_self_output(*args, eps=eps, tile_k=128))
    check(out, ref, 1e-2, 1e-2, "k-tiled")

    # 5) bf16 activations in / bf16 out (halves the activation HBM traffic).
    args = make_inputs(512, 256, keys[2], act_dtype=jnp.bfloat16)
    out = jax.block_until_ready(bert_self_output(*args, eps=eps))
    check(out, bert_self_output_ref(*args, eps=eps), 5e-2, 5e-2, "bf16-io")

    print("KERNEL_OK")
</pallas_src>

<mosaic_0001>
module attributes {stable_mosaic.version = 11 : i64} {
  func.func @_self_output_kernel(%arg0: i32, %arg1: memref<8x32xf32, #tpu.memory_space<vmem>>, %arg2: memref<8x32xf32, #tpu.memory_space<vmem>>, %arg3: memref<32x32xf32, #tpu.memory_space<vmem>>, %arg4: memref<1x32xf32, #tpu.memory_space<vmem>>, %arg5: memref<1x32xf32, #tpu.memory_space<vmem>>, %arg6: memref<1x32xf32, #tpu.memory_space<vmem>>, %arg7: memref<8x32xf32, #tpu.memory_space<vmem>>) attributes {dimension_semantics = [#tpu.dimension_semantics<parallel>], iteration_bounds = array<i64: 1>, scalar_prefetch = 0 : i64, scratch_operands = 0 : i64, tpu.core_type = #tpu.core_type<tc>, window_params = [{transform_indices = @transform_0, window_bounds = array<i64: 8, 32>}, {transform_indices = @transform_1, window_bounds = array<i64: 8, 32>}, {pipeline_mode = #tpu.pipeline_mode<synchronous>, transform_indices = @transform_2, window_bounds = array<i64: 32, 32>}, {pipeline_mode = #tpu.pipeline_mode<synchronous>, transform_indices = @transform_3, window_bounds = array<i64: 1, 32>}, {pipeline_mode = #tpu.pipeline_mode<synchronous>, transform_indices = @transform_4, window_bounds = array<i64: 1, 32>}, {pipeline_mode = #tpu.pipeline_mode<synchronous>, transform_indices = @transform_5, window_bounds = array<i64: 1, 32>}, {transform_indices = @transform_6, window_bounds = array<i64: 8, 32>}]} {
    %c0 = arith.constant 0 : index
    %c0_0 = arith.constant 0 : index
    %0 = vector.load %arg1[%c0, %c0_0] : memref<8x32xf32, #tpu.memory_space<vmem>>, vector<8x32xf32>
    %c0_1 = arith.constant 0 : index
    %c0_2 = arith.constant 0 : index
    %1 = vector.load %arg3[%c0_1, %c0_2] : memref<32x32xf32, #tpu.memory_space<vmem>>, vector<32x32xf32>
    %cst = arith.constant dense<0.000000e+00> : vector<8x32xf32>
    %2 = tpu.matmul %0, %1, %cst {dimension_numbers = #tpu.dot_dimension_numbers<[1], [0], [0], [1], [0, 0, 1, 1], [], []>} : vector<8x32xf32>, vector<32x32xf32>, vector<8x32xf32> -> vector<8x32xf32>
    %c0_3 = arith.constant 0 : index
    %c0_4 = arith.constant 0 : index
    %3 = vector.load %arg2[%c0_3, %c0_4] : memref<8x32xf32, #tpu.memory_space<vmem>>, vector<8x32xf32>
    %c0_5 = arith.constant 0 : index
    %c0_6 = arith.constant 0 : index
    %4 = vector.load %arg4[%c0_5, %c0_6] : memref<1x32xf32, #tpu.memory_space<vmem>>, vector<1x32xf32>
    %5 = vector.broadcast %4 : vector<1x32xf32> to vector<8x32xf32>
    %6 = arith.addf %3, %5 : vector<8x32xf32>
    %7 = arith.addf %2, %6 : vector<8x32xf32>
    %cst_7 = arith.constant dense<0.000000e+00> : vector<8xf32>
    %8 = vector.multi_reduction <add>, %7, %cst_7 [1] : vector<8x32xf32> to vector<8xf32>
    %9 = vector.shape_cast %8 : vector<8xf32> to vector<8x1xf32>
    %cst_8 = arith.constant 3.200000e+01 : f32
    %10 = vector.broadcast %cst_8 : f32 to vector<8x1xf32>
    %11 = arith.divf %9, %10 : vector<8x1xf32>
    %12 = vector.broadcast %11 : vector<8x1xf32> to vector<8x32xf32>
    %13 = arith.subf %7, %12 : vector<8x32xf32>
    %14 = arith.mulf %13, %13 : vector<8x32xf32>
    %cst_9 = arith.constant dense<0.000000e+00> : vector<8xf32>
    %15 = vector.multi_reduction <add>, %14, %cst_9 [1] : vector<8x32xf32> to vector<8xf32>
    %16 = vector.shape_cast %15 : vector<8xf32> to vector<8x1xf32>
    %cst_10 = arith.constant 3.200000e+01 : f32
    %17 = vector.broadcast %cst_10 : f32 to vector<8x1xf32>
    %18 = arith.divf %16, %17 : vector<8x1xf32>
    %cst_11 = arith.constant 9.99999996E-13 : f32
    %19 = vector.broadcast %cst_11 : f32 to vector<8x1xf32>
    %20 = arith.addf %18, %19 : vector<8x1xf32>
    %21 = math.rsqrt %20 : vector<8x1xf32>
    %22 = vector.broadcast %21 : vector<8x1xf32> to vector<8x32xf32>
    %23 = arith.mulf %13, %22 : vector<8x32xf32>
    %c0_12 = arith.constant 0 : index
    %c0_13 = arith.constant 0 : index
    %24 = vector.load %arg5[%c0_12, %c0_13] : memref<1x32xf32, #tpu.memory_space<vmem>>, vector<1x32xf32>
    %25 = vector.broadcast %24 : vector<1x32xf32> to vector<8x32xf32>
    %26 = arith.mulf %23, %25 : vector<8x32xf32>
    %c0_14 = arith.constant 0 : index
    %c0_15 = arith.constant 0 : index
    %27 = vector.load %arg6[%c0_14, %c0_15] : memref<1x32xf32, #tpu.memory_space<vmem>>, vector<1x32xf32>
    %28 = vector.broadcast %27 : vector<1x32xf32> to vector<8x32xf32>
    %29 = arith.addf %26, %28 : vector<8x32xf32>
    %c0_16 = arith.constant 0 : index
    %c0_17 = arith.constant 0 : index
    %30 = vector.load %arg7[%c0_16, %c0_17] : memref<8x32xf32, #tpu.memory_space<vmem>>, vector<8x32xf32>
    tpu.vector_store %arg7[%c0_16, %c0_17], %29 {strides = array<i32>} : memref<8x32xf32, #tpu.memory_space<vmem>>, vector<8x32xf32>,
    return
  }
  func.func @transform_0(%arg0: i32) -> (i32, i32) {
    %c0_i32 = arith.constant 0 : i32
    %c0_i32_0 = arith.constant 0 : i32
    return %arg0, %c0_i32 : i32, i32
  }
  func.func @transform_1(%arg0: i32) -> (i32, i32) {
    %c0_i32 = arith.constant 0 : i32
    %c0_i32_0 = arith.constant 0 : i32
    return %arg0, %c0_i32 : i32, i32
  }
  func.func @transform_2(%arg0: i32) -> (i32, i32) {
    %c0_i32 = arith.constant 0 : i32
    %c0_i32_0 = arith.constant 0 : i32
    %c0_i32_1 = arith.constant 0 : i32
    return %c0_i32, %c0_i32_0 : i32, i32
  }
  func.func @transform_3(%arg0: i32) -> (i32, i32) {
    %c0_i32 = arith.constant 0 : i32
    %c0_i32_0 = arith.constant 0 : i32
    %c0_i32_1 = arith.constant 0 : i32
    return %c0_i32, %c0_i32_0 : i32, i32
  }
  func.func @transform_4(%arg0: i32) -> (i32, i32) {
    %c0_i32 = arith.constant 0 : i32
    %c0_i32_0 = arith.constant 0 : i32
    %c0_i32_1 = arith.constant 0 : i32
    return %c0_i32, %c0_i32_0 : i32, i32
  }
  func.func @transform_5(%arg0: i32) -> (i32, i32) {
    %c0_i32 = arith.constant 0 : i32
    %c0_i32_0 = arith.constant 0 : i32
    %c0_i32_1 = arith.constant 0 : i32
    return %c0_i32, %c0_i32_0 : i32, i32
  }
  func.func @transform_6(%arg0: i32) -> (i32, i32) {
    %c0_i32 = arith.constant 0 : i32
    %c0_i32_0 = arith.constant 0 : i32
    return %arg0, %c0_i32 : i32, i32
  }
}

</mosaic_0001>

<llo_original>
// kernel: tpu_custom_call.1
$region0: #{tpu_custom_call.1}
  #allocation0 [shape = 'u32[]', space=smem, size = 0x4, offset = 0x4, fixed_abs, tag = 'smem constant byte address 0x4 - core index']
  #allocation1 [shape = 'u32[72,128]{1,0:T(1,128)}', space=vmem, size = 0x9000, scoped, tag = 'internal scratch']
  %s0 = inlined_call_operand.hbm [shape: f32[8,32], index: 0, kind: input, shape index: {}]
  %s1 = inlined_call_operand.hbm [shape: f32[8,32], index: 1, kind: input, shape index: {}]
  %s2 = inlined_call_operand.hbm [shape: f32[32,32], index: 2, kind: input, shape index: {}]
  %s3 = inlined_call_operand.vmem [shape: f32[1,32], index: 3, kind: input, shape index: {}]
  %s4 = inlined_call_operand.vmem [shape: f32[1,32], index: 4, kind: input, shape index: {}]
  %s5 = inlined_call_operand.vmem [shape: f32[1,32], index: 5, kind: input, shape index: {}]
  %s6 = inlined_call_operand.hbm [shape: f32[8,32], index: 6, kind: output, shape index: {}]
  %s7 = sld [smem:[#allocation0]]
  $region46: #{tpu_custom_call.1} parent=0
    _
  %s9 = ssub.s32 1, %s7
  %s10 = scalar_select 0, %s9, %s7
  $region1: #{tpu_custom_call.1} parent=0
    #allocation2 [shape = 'u8[4096]{0}', space=vmem, size = 0x1000, scoped, tag = 'input window, operand 0, single buffered']
    #allocation3 [shape = 's32[1]{0}', space=sflag, size = 0x4, scoped, tag = 'scoped memory for tpu_custom_call.1']
    #allocation4 [shape = 's32[1]{0}', space=sflag, size = 0x4, scoped, tag = 'scoped memory for tpu_custom_call.1']
    #allocation5 [shape = 'u8[4096]{0}', space=vmem, size = 0x1000, scoped, tag = 'input window, operand 1, single buffered']
    #allocation6 [shape = 's32[1]{0}', space=sflag, size = 0x4, scoped, tag = 'scoped memory for tpu_custom_call.1']
    #allocation7 [shape = 'u8[16384]{0}', space=vmem, size = 0x4000, scoped, tag = 'input window, operand 2, single buffered']
    #allocation8 [shape = 'u8[4096]{0}', space=vmem, size = 0x1000, scoped, tag = 'output window, operand 0, single buffered']
    %11 = vsyncpa [#allocation3], 0
    %12 = vsyncpa [#allocation6], 0
    %13 = vsyncpa [#allocation4], 0
    // Predicated region
    $region2: #{tpu_custom_call.1} parent=1 // pred_check
      _
    $region3: #{tpu_custom_call.1} parent=1 // pred_check_branch
      %15 = sbr.rel (0) target = $region5
    $region4: #{tpu_custom_call.1} parent=1 // pred_region
      %17 = vsyncadd [#allocation3], 0
      %s19 = sshll.u32 %s0, 4
      %s20 = int_to_ptr.hbm [resolvable:$true] %s19
      %s21 = sshll.u32 [#allocation2], 4
      %s22 = int_to_ptr.vmem [resolvable:$true] %s21
      %24 = dma.hbm_to_vmem [thread:$0]  %s20, 128, %s22, [#allocation3]
    $region5: #{tpu_custom_call.1} parent=1 // pred_fallthru
      _
    // Predicated region
    $region6: #{tpu_custom_call.1} parent=1 // pred_check
      _
    $region7: #{tpu_custom_call.1} parent=1 // pred_check_branch
      %26 = sbr.rel (0) target = $region9
    $region8: #{tpu_custom_call.1} parent=1 // pred_region
      %28 = vsyncadd [#allocation6], 0
      %s30 = sshll.u32 %s1, 4
      %s31 = int_to_ptr.hbm [resolvable:$true] %s30
      %s32 = sshll.u32 [#allocation5], 4
      %s33 = int_to_ptr.vmem [resolvable:$true] %s32
      %35 = dma.hbm_to_vmem [thread:$0]  %s31, 128, %s33, [#allocation6]
    $region9: #{tpu_custom_call.1} parent=1 // pred_fallthru
      _
    // Predicated region
    $region10: #{tpu_custom_call.1} parent=1 // pred_check
      _
    $region11: #{tpu_custom_call.1} parent=1 // pred_check_branch
      %37 = sbr.rel (0) target = $region13
    $region12: #{tpu_custom_call.1} parent=1 // pred_region
      %39 = vsyncadd [#allocation6], 0
      %s40 = sshll.u32 %s2, 4
      %s41 = int_to_ptr.hbm [resolvable:$true] %s40
      %s42 = sshll.u32 [#allocation7], 4
      %s43 = int_to_ptr.vmem [resolvable:$true] %s42
      %48 = dma.hbm_to_vmem [thread:$0]  %s41, 512, %s43, [#allocation6], 128, 128, 8
    $region13: #{tpu_custom_call.1} parent=1 // pred_fallthru
      _
    // Predicated region
    $region14: #{tpu_custom_call.1} parent=1 // pred_check
      _
    $region15: #{tpu_custom_call.1} parent=1 // pred_check_branch
      %50 = sbr.rel (0) target = $region17
    $region16: #{tpu_custom_call.1} parent=1 // pred_region
      _
    $region17: #{tpu_custom_call.1} parent=1 // pred_fallthru
      _
    // Predicated region
    $region18: #{tpu_custom_call.1} parent=1 // pred_check
      _
    $region19: #{tpu_custom_call.1} parent=1 // pred_check_branch
      %52 = sbr.rel (0) target = $region21
    $region20: #{tpu_custom_call.1} parent=1 // pred_region
      _
    $region21: #{tpu_custom_call.1} parent=1 // pred_fallthru
      _
    // Predicated region
    $region22: #{tpu_custom_call.1} parent=1 // pred_check
      _
    $region23: #{tpu_custom_call.1} parent=1 // pred_check_branch
      %54 = sbr.rel (0) target = $region25
    $region24: #{tpu_custom_call.1} parent=1 // pred_region
      _
    $region25: #{tpu_custom_call.1} parent=1 // pred_fallthru
      _
    // Predicated region
    $region26: #{tpu_custom_call.1} parent=1 // pred_check
      _
    $region27: #{tpu_custom_call.1} parent=1 // pred_check_branch
      %56 = sbr.rel (0) target = $region29
    $region28: #{tpu_custom_call.1} parent=1 // pred_region
      %58 = dma.done [#allocation3], 128
    $region29: #{tpu_custom_call.1} parent=1 // pred_fallthru
      _
    // Predicated region
    $region30: #{tpu_custom_call.1} parent=1 // pred_check
      _
    $region31: #{tpu_custom_call.1} parent=1 // pred_check_branch
      %60 = sbr.rel (0) target = $region33
    $region32: #{tpu_custom_call.1} parent=1 // pred_region
      %62 = dma.done [#allocation6], 128
    $region33: #{tpu_custom_call.1} parent=1 // pred_fallthru
      _
    // Predicated region
    $region34: #{tpu_custom_call.1} parent=1 // pred_check
      _
    $region35: #{tpu_custom_call.1} parent=1 // pred_check_branch
      %64 = sbr.rel (0) target = $region37
    $region36: #{tpu_custom_call.1} parent=1 // pred_region
      %66 = dma.done [#allocation6], 512
    $region37: #{tpu_custom_call.1} parent=1 // pred_fallthru
      _
    %v67 = vld [vmem:[#allocation2] sm:$0xff]
    %v68 = vld [vmem:[#allocation7] sm:$0xff]
    %v69 = vld [vmem:[#allocation7 + $0x8] sm:$0xff]
    %v70 = vld [vmem:[#allocation7 + $0x10] sm:$0xff]
    %v71 = vld [vmem:[#allocation7 + $0x18] sm:$0xff]
    %v72 = vld [vmem:[#allocation5] sm:$0xff]
    %v73 = vld [vmem:[%s3] sm:$0x1]
    %v75 = vperm.slane %v73, 0
    %v77 = vadd.f32 %v72, %v75
    %vm78 = vcmask 261120
    %v80 = vsel %vm78, %v67, 0
    %82 = vmatpush.msra.mxu0 0.0
    %83 = vmatpush.msra.mxu0 0.0
    %84 = vmatpush.msra.mxu0 0.0
    %85 = vmatpush.msra.mxu0 0.0
    %86 = vmatpush.msra.mxu0 0.0
    %87 = vmatpush.msra.mxu0 0.0
    %88 = vmatpush.msra.mxu0 0.0
    %89 = vmatpush.msra.mxu0 0.0
    %90 = vmatpush.msra.mxu0 0.0
    %91 = vmatpush.msra.mxu0 0.0
    %92 = vmatpush.msra.mxu0 0.0
    %93 = vmatpush.msra.mxu0 0.0
    %94 = vmatpush.msra.mxu0 %v71
    %95 = vmatpush.msra.mxu0 %v70
    %96 = vmatpush.msra.mxu0 %v69
    %97 = vmatpush.msra.mxu0 %v68
    %98 = vmatmul.f32.gmra.mxu0 %v80
    %v99 = vpop.f32.mrf.mxu0
    %v100 = vadd.f32 %v77, %v99
    %101 = vdwg.mxu0
    %v102 = vsel %vm78, %v100, 0.0
    %103 = vadd.xlane.f32.xlu0 %v102
    %v104 = vpop.xlane.xlu0 %103
    %v105 = vrcp.pop 32.0
    %v106 = vmul.f32 32.0, %v105
    %v107 = vsub.f32 1.0, %v106
    %v108 = vmul.f32 %v105, %v107
    %v109 = vadd.f32 %v105, %v108
    %vm110 = vweird.f32 %v105
    %v111 = vsel %vm110, %v105, %v109
    %v112 = vmul.f32 %v104, %v111
    %v113 = vsub.f32 %v100, %v112
    %v114 = vmul.f32 %v113, %v113
    %v115 = vsel %vm78, %v114, 0.0
    %116 = vadd.xlane.f32.xlu0 %v115
    %v117 = vpop.xlane.xlu0 %116
    %v118 = vmul.f32 %v117, %v111
    %v119 = vadd.f32 %v118, 1e-12
    %v120 = vrsqrt.pop %v119
    %v121 = vmul.f32 %v120, %v119
    %v122 = vmul.f32 %v121, %v120
    %v123 = vmul.f32 0.5, %v122
    %v124 = vsub.f32 1.5, %v123
    %v125 = vmul.f32 %v120, %v124
    %vm126 = vweird.f32 %v119
    %vm127 = vweird.f32 %v120
    %vm128 = vmor %vm126, %vm127
    %v129 = vsel %vm128, %v120, %v125
    %v130 = vmul.f32 %v113, %v129
    %v131 = vld [vmem:[%s4] sm:$0x1]
    %v133 = vperm.slane %v131, 0
    %v135 = vmul.f32 %v130, %v133
    %v136 = vld [vmem:[%s5] sm:$0x1]
    %v138 = vperm.slane %v136, 0
    %v140 = vadd.f32 %v135, %v138
    %141 = vst.msk [vmem:[#allocation8] sm:$0xff] %vm78, %v140
    // Predicated region
    $region38: #{tpu_custom_call.1} parent=1 // pred_check
      _
    $region39: #{tpu_custom_call.1} parent=1 // pred_check_branch
      %143 = sbr.rel (0) target = $region41
    $region40: #{tpu_custom_call.1} parent=1 // pred_region
      %145 = vsyncadd [#allocation4], 0
      %s147 = sshll.u32 [#allocation8], 4
      %s148 = int_to_ptr.vmem [resolvable:$true] %s147
      %s149 = sshll.u32 %s6, 4
      %s150 = int_to_ptr.hbm [resolvable:$true] %s149
      %152 = dma.vmem_to_hbm [thread:$0]  %s148, 128, %s150, [#allocation4]
    $region41: #{tpu_custom_call.1} parent=1 // pred_fallthru
      _
    // Predicated region
    $region42: #{tpu_custom_call.1} parent=1 // pred_check
      _
    $region43: #{tpu_custom_call.1} parent=1 // pred_check_branch
      %154 = sbr.rel (0) target = $region45
    $region44: #{tpu_custom_call.1} parent=1 // pred_region
      %156 = dma.done [#allocation4], 128
    $region45: #{tpu_custom_call.1} parent=1 // pred_fallthru
      _
    %157 = vsyncpa [#allocation3], 1
    %158 = vsyncpa [#allocation6], 1
    %159 = vsyncpa [#allocation4], 1

</llo_original>
